<compile_context>
chip_gen: v5e
topology: v5e:2x2
jax: 0.10.0
libtpu: 0.0.40
codegen_flags: <defaults>
</compile_context>

<pallas_src>
import jax
import jax.numpy as jnp
from jax.experimental import pallas as pl
from jax.experimental.pallas import tpu as pltpu

# Module hyper-parameters (defaults of EmbeddingLoss.__init__)
SIGMA = 1.0
MARGIN = 1.0

LANE = 128  # TPU lane width

# Small synthetic shapes (module only requires 2-D embeds with N >= B)
B = 8    # batch (num queries / targets)
N = 16   # num candidate items (>= B)
D = 32   # embedding dim
P = 2    # num positive indices per query


def _make_kernel(*, tn, npc, n_actual, num_pos, sigma, margin, mask_tail):
    """Build the kernel with static tile/shape constants closed over."""

    def kernel(user_ref, usq_ref, rowidx_ref, item_ref, isq_ref, colidx_ref,
               out_ref, acc_ref):
        # user_ref:   (tb, D)  compute_dtype      usq_ref:   (tb, 1)   f32
        # rowidx_ref: (tb, 1+P) int32 [idx_q|pos] item_ref:  (tn, D)   compute_dtype
        # isq_ref:    (1, tn)  f32                colidx_ref:(1, tn)   int32
        # out_ref:    (1, tb, 1) f32 partial      acc_ref:   (tb, 1)   f32 scratch
        j = pl.program_id(2)

        @pl.when(j == 0)
        def _():
            acc_ref[...] = jnp.zeros_like(acc_ref)

        # MXU cross term; contract D of both operands directly (no .T relayout).
        cross = jax.lax.dot_general(
            user_ref[...], item_ref[...],
            dimension_numbers=(((1,), (1,)), ((), ())),
            preferred_element_type=jnp.float32)                    # (tb, tn) f32

        # usq' = margin + 0.5*sigma*|u|^2, isq' = 0.5*sigma*|i|^2 (precomputed),
        # so relu(margin + sigma*max(0.5*|u-i|^2, 0)) collapses to one add + max.
        aff = usq_ref[...] + isq_ref[...]
        if sigma == 1.0:
            aff = aff - cross
        else:
            aff = aff - sigma * cross
        if sigma >= 0.0:
            losses = jnp.maximum(aff, max(margin, 0.0))
        else:
            losses = jnp.maximum(jnp.minimum(aff, margin), 0.0)

        # accidental-hit mask: query idx or any positive idx equals the item idx
        rowidx = rowidx_ref[...]                                   # (tb, 1+P)
        colidx = colidx_ref[...]                                   # (1, tn)
        hits = rowidx[:, 0:1] == colidx
        for p in range(num_pos):                                   # static unroll
            hits = hits | (rowidx[:, p + 1:p + 2] == colidx)
        if mask_tail:
            # ragged tail / phantom split tiles: mask by *nominal* column offset
            off = (pl.program_id(0) * npc + j) * tn
            col = jax.lax.broadcasted_iota(jnp.int32, (1, tn), 1)
            hits = hits | (col + off >= n_actual)

        # one cross-lane reduce per step (count reduce moved to the wrapper)
        acc_ref[...] += jnp.sum(jnp.where(hits, 0.0, losses), axis=-1, keepdims=True)

        @pl.when(j == pl.num_programs(2) - 1)
        def _():
            out_ref[0] = acc_ref[...]

    return kernel


def _auto_tiles(b, n, d, compute_itemsize, vmem_budget_bytes):
    """Pick (tb, tn): whole batch resident when possible, item tile from budget."""
    row_bytes = max(d * compute_itemsize, 1)
    tb_cap = max(16, (vmem_budget_bytes // 3) // row_bytes)
    if b <= tb_cap:
        tb = b                           # batch resident -> item streamed once
    else:
        tb = (tb_cap // 16) * 16         # sublane-packing safe for f32 and bf16
    rem = max(vmem_budget_bytes - tb * row_bytes, 1)
    # double-buffered item blocks + ~6 (tb, tn) f32 elementwise temporaries
    per_col = 2 * d * compute_itemsize + 6 * tb * 4 + 16
    tn = rem // per_col
    if tn >= n:
        tn = n                           # single tile; block dim == full dim is legal
    else:
        tn = min(2048, max(LANE, (tn // LANE) * LANE))   # lane-aligned streamed tiles
    return tb, tn


def embedding_contrastive_loss(user_embed, item_embed, target, item_idx, pos_idx, *,
                               sigma=SIGMA, margin=MARGIN,
                               compute_dtype=jnp.bfloat16,
                               tb=None, tn=None, negatives_splits=None,
                               item_buffers=2,
                               vmem_budget_bytes=36 << 20):
    """Pallas wrapper for EmbeddingLoss.contrastive_loss (hard_negatives_ratio=None).

    compute_dtype=bf16 (default) halves streamed HBM bytes and doubles MXU rate on
    all of v5e/v6e/v7x (f32 slabs and accumulation are kept); pass
    compute_dtype=jnp.float32 when ~1e-5 agreement with an f32 reference is needed.
    """
    b, d = user_embed.shape
    n, d2 = item_embed.shape
    assert d == d2 and n >= b, "item_embed must be (N>=B, D) with matching D"
    num_pos = pos_idx.shape[1]
    csize = jnp.dtype(compute_dtype).itemsize

    auto_tb, auto_tn = _auto_tiles(b, n, d, csize, vmem_budget_bytes)
    tb = auto_tb if tb is None else tb
    tn = auto_tn if tn is None else tn
    if tb < b:
        mult = 16 if csize < 4 else 8    # bf16 needs 16-row sublane packing
        assert tb % mult == 0, f"tb={tb} must be a multiple of {mult} when tb < B"
    if tn < n:
        assert tn % LANE == 0, f"tn={tn} must be a multiple of {LANE} when tn < N"

    b_tiles = pl.cdiv(b, tb)
    n_tiles = pl.cdiv(n, tn)
    # v7x has 2 TensorCores: keep >=2 tiles on a "parallel" axis when possible.
    if negatives_splits is None:
        splits = 2 if (b_tiles == 1 and n_tiles >= 2) else 1
    else:
        splits = max(1, min(int(negatives_splits), n_tiles))
    npc = pl.cdiv(n_tiles, splits)       # negative tiles per split

    # f32 slabs: hoist the per-tile reduces and fold margin / 0.5*sigma into them.
    uf = user_embed.astype(jnp.float32)
    itf = item_embed.astype(jnp.float32)
    usq = margin + 0.5 * sigma * jnp.sum(uf * uf, axis=-1, keepdims=True)   # (B, 1)
    isq = (0.5 * sigma * jnp.sum(itf * itf, axis=-1))[None, :]              # (1, N)
    user_c = uf.astype(compute_dtype)
    item_c = itf.astype(compute_dtype)
    row_idx = jnp.concatenate([item_idx[:b, None], pos_idx],
                              axis=1).astype(jnp.int32)                     # (B, 1+P)
    col_idx = item_idx[None, :].astype(jnp.int32)                           # (1, N)

    if splits == 1:
        item_map = lambda c, i, j: (j, 0)
        cola_map = lambda c, i, j: (0, j)
    else:
        last = n_tiles - 1               # clamp phantom tiles; masked via nominal off
        item_map = lambda c, i, j: (jnp.minimum(c * npc + j, last), 0)
        cola_map = lambda c, i, j: (0, jnp.minimum(c * npc + j, last))
    row_map = lambda c, i, j: (i, 0)
    out_map = lambda c, i, j: (c, i, 0)

    item_spec_kwargs = {}
    if item_buffers != 2:                # optional deeper item-stream pipeline
        item_spec_kwargs["pipeline_mode"] = pl.Buffered(item_buffers)

    kernel = _make_kernel(tn=tn, npc=npc, n_actual=n, num_pos=num_pos,
                          sigma=float(sigma), margin=float(margin),
                          mask_tail=(splits * npc * tn) > n)

    # Explicit VMEM sizing: resident user block + multi-buffered item stream +
    # small aux blocks + ~6 (tb, tn) f32 temporaries; capped for v7x's 64 MiB.
    est = (2 * tb * d * csize
           + max(2, item_buffers) * tn * d * csize
           + 2 * tn * 8 + 2 * tb * 4 * (2 + num_pos) + 2 * tb * 4 + tb * 4
           + 6 * tb * tn * 4)
    vmem_limit = min(max(int(1.5 * est) + (4 << 20), 32 << 20), 56 << 20)

    partial = pl.pallas_call(
        kernel,
        out_shape=jax.ShapeDtypeStruct((splits, b, 1), jnp.float32),
        grid_spec=pltpu.PrefetchScalarGridSpec(
            num_scalar_prefetch=0,
            grid=(splits, b_tiles, npc),
            in_specs=[
                pl.BlockSpec((tb, d), row_map),                        # user (resident)
                pl.BlockSpec((tb, 1), row_map),                        # margin + .5*s*|u|^2
                pl.BlockSpec((tb, 1 + num_pos), row_map),              # [idx_q | pos_idx]
                pl.BlockSpec((tn, d), item_map, **item_spec_kwargs),   # item (streamed)
                pl.BlockSpec((1, tn), cola_map),                       # .5*s*|i|^2
                pl.BlockSpec((1, tn), cola_map),                       # item_idx
            ],
            out_specs=pl.BlockSpec((1, tb, 1), out_map),
            scratch_shapes=[pltpu.VMEM((tb, 1), jnp.float32)],         # row accumulator
        ),
        compiler_params=pltpu.CompilerParams(
            dimension_semantics=("parallel", "parallel", "arbitrary"),
            vmem_limit_bytes=vmem_limit),
    )(user_c, usq, row_idx, item_c, isq, col_idx)

    # Denominator depends only on the indices -> computed once here, not per tile.
    hits = row_idx[:, 0:1] == col_idx
    hits = hits | jnp.any(pos_idx[:, :, None] == item_idx[None, None, :], axis=1)
    neg_cnt = jnp.sum(~hits, axis=-1).astype(jnp.float32)                   # (B,)

    per_row = jnp.sum(partial, axis=0)[:, 0]                                # (B,)
    loss = per_row / (neg_cnt + 1e-10)
    return jnp.sum(loss * jnp.abs(target.astype(jnp.float32)))


def _reference_loss(user_embed, item_embed, target, item_idx, pos_idx, *,
                    sigma=SIGMA, margin=MARGIN):
    """Plain-JAX reference mirroring the PyTorch contrastive_loss semantics."""
    b = user_embed.shape[0]
    u = user_embed.astype(jnp.float32)
    it = item_embed.astype(jnp.float32)
    diff = u[:, None, :] - it[None, :, :]
    sq = 0.5 * jnp.sum(diff * diff, axis=-1)
    losses = jax.nn.relu(margin + sq * sigma)
    hits = item_idx[:b, None] == item_idx[None, :]
    hits = hits | jnp.any(pos_idx[:, :, None] == item_idx[None, None, :], axis=1)
    mask = (~hits).astype(jnp.float32)
    denom = mask.sum(axis=-1, keepdims=True) + 1e-10
    loss = (losses * mask / denom).sum(axis=-1)
    return jnp.sum(loss * jnp.abs(target))


if __name__ == "__main__":
    key = jax.random.PRNGKey(0)
    k1, k2, k3, k4, k5 = jax.random.split(key, 5)

    user_embed = jax.random.normal(k1, (B, D), dtype=jnp.float32)
    item_embed = jax.random.normal(k2, (N, D), dtype=jnp.float32)
    target = jax.random.uniform(k3, (B,), dtype=jnp.float32, minval=0.5, maxval=1.5)
    # small id space so some accidental hits actually occur
    item_idx = jax.random.randint(k4, (N,), 0, 10, dtype=jnp.int32)
    pos_idx = jax.random.randint(k5, (B, P), 0, 10, dtype=jnp.int32)

    ref = _reference_loss(user_embed, item_embed, target, item_idx, pos_idx)

    # 1) exact-precision path at the small module shapes
    out = embedding_contrastive_loss(user_embed, item_embed, target, item_idx,
                                     pos_idx, compute_dtype=jnp.float32)
    out = jax.block_until_ready(out)
    assert jnp.allclose(out, ref, rtol=1e-5, atol=1e-5), (out, ref)

    # 2) default bf16 streamed-operand path (f32 slabs/accumulation), looser tol
    out_bf16 = jax.block_until_ready(
        embedding_contrastive_loss(user_embed, item_embed, target, item_idx, pos_idx))
    assert jnp.allclose(out_bf16, ref, rtol=5e-2, atol=5e-2), (out_bf16, ref)

    # 3) multi-tile negatives stream: exercises the 2-way negatives split (for
    #    v7x's 2 TensorCores), the ragged last tile and the clamped phantom tile.
    k6, k7, k8, k9, k10 = jax.random.split(jax.random.PRNGKey(1), 5)
    B2, N2, D2 = 8, 600, 96
    ue2 = jax.random.normal(k6, (B2, D2), dtype=jnp.float32)
    ie2 = jax.random.normal(k7, (N2, D2), dtype=jnp.float32)
    tg2 = jax.random.uniform(k8, (B2,), dtype=jnp.float32, minval=0.5, maxval=1.5)
    ii2 = jax.random.randint(k9, (N2,), 0, 50, dtype=jnp.int32)
    pi2 = jax.random.randint(k10, (B2, P), 0, 50, dtype=jnp.int32)
    out2 = jax.block_until_ready(
        embedding_contrastive_loss(ue2, ie2, tg2, ii2, pi2,
                                   compute_dtype=jnp.float32, tn=256))
    ref2 = _reference_loss(ue2, ie2, tg2, ii2, pi2)
    assert jnp.allclose(out2, ref2, rtol=1e-4, atol=1e-3), (out2, ref2)

    print("KERNEL_OK")
</pallas_src>

<mosaic_0001>
module attributes {stable_mosaic.version = 11 : i64} {
  func.func @kernel(%arg0: i32, %arg1: i32, %arg2: i32, %arg3: memref<8x32xf32, #tpu.memory_space<vmem>>, %arg4: memref<8x1xf32, #tpu.memory_space<vmem>>, %arg5: memref<8x3xi32, #tpu.memory_space<vmem>>, %arg6: memref<16x32xf32, #tpu.memory_space<vmem>>, %arg7: memref<1x16xf32, #tpu.memory_space<vmem>>, %arg8: memref<1x16xi32, #tpu.memory_space<vmem>>, %arg9: memref<1x8x1xf32, #tpu.memory_space<vmem>>, %arg10: memref<8x1xf32, #tpu.memory_space<vmem>>) attributes {dimension_semantics = [#tpu.dimension_semantics<parallel>, #tpu.dimension_semantics<parallel>, #tpu.dimension_semantics<arbitrary>], iteration_bounds = array<i64: 1, 1, 1>, scalar_prefetch = 0 : i64, scratch_operands = 1 : i64, tpu.core_type = #tpu.core_type<tc>, window_params = [{transform_indices = @transform_0, window_bounds = array<i64: 8, 32>}, {transform_indices = @transform_1, window_bounds = array<i64: 8, 1>}, {transform_indices = @transform_2, window_bounds = array<i64: 8, 3>}, {transform_indices = @transform_3, window_bounds = array<i64: 16, 32>}, {transform_indices = @transform_4, window_bounds = array<i64: 1, 16>}, {transform_indices = @transform_5, window_bounds = array<i64: 1, 16>}, {transform_indices = @transform_6, window_bounds = array<i64: 1, 8, 1>}]} {
    %c0_i32 = arith.constant 0 : i32
    %0 = arith.cmpi eq, %arg2, %c0_i32 : i32
    %1 = arith.extui %0 : i1 to i32
    %c0_i32_0 = arith.constant 0 : i32
    %2 = arith.cmpi ne, %1, %c0_i32_0 : i32
    scf.if %2 {
      %cst_21 = arith.constant 0.000000e+00 : f32
      %40 = vector.broadcast %cst_21 : f32 to vector<8x1xf32>
      %c0_22 = arith.constant 0 : index
      %c0_23 = arith.constant 0 : index
      %41 = vector.load %arg10[%c0_22, %c0_23] : memref<8x1xf32, #tpu.memory_space<vmem>>, vector<8x1xf32>
      tpu.vector_store %arg10[%c0_22, %c0_23], %40 {strides = array<i32>} : memref<8x1xf32, #tpu.memory_space<vmem>>, vector<8x1xf32>,
    } else {
    }
    %c0 = arith.constant 0 : index
    %c0_1 = arith.constant 0 : index
    %3 = vector.load %arg3[%c0, %c0_1] : memref<8x32xf32, #tpu.memory_space<vmem>>, vector<8x32xf32>
    %c0_2 = arith.constant 0 : index
    %c0_3 = arith.constant 0 : index
    %4 = vector.load %arg6[%c0_2, %c0_3] : memref<16x32xf32, #tpu.memory_space<vmem>>, vector<16x32xf32>
    %cst = arith.constant dense<0.000000e+00> : vector<8x16xf32>
    %5 = tpu.matmul %3, %4, %cst {dimension_numbers = #tpu.dot_dimension_numbers<[1], [1], [0], [0], [0, 0, 1, 0], [], []>} : vector<8x32xf32>, vector<16x32xf32>, vector<8x16xf32> -> vector<8x16xf32>
    %c0_4 = arith.constant 0 : index
    %c0_5 = arith.constant 0 : index
    %6 = vector.load %arg4[%c0_4, %c0_5] : memref<8x1xf32, #tpu.memory_space<vmem>>, vector<8x1xf32>
    %c0_6 = arith.constant 0 : index
    %c0_7 = arith.constant 0 : index
    %7 = vector.load %arg7[%c0_6, %c0_7] : memref<1x16xf32, #tpu.memory_space<vmem>>, vector<1x16xf32>
    %8 = vector.broadcast %6 : vector<8x1xf32> to vector<8x16xf32>
    %9 = vector.broadcast %7 : vector<1x16xf32> to vector<8x16xf32>
    %10 = arith.addf %8, %9 : vector<8x16xf32>
    %11 = arith.subf %10, %5 : vector<8x16xf32>
    %cst_8 = arith.constant 1.000000e+00 : f32
    %12 = vector.broadcast %cst_8 : f32 to vector<8x16xf32>
    %13 = arith.maximumf %11, %12 : vector<8x16xf32>
    %c0_9 = arith.constant 0 : index
    %c0_10 = arith.constant 0 : index
    %14 = vector.load %arg5[%c0_9, %c0_10] : memref<8x3xi32, #tpu.memory_space<vmem>>, vector<8x3xi32>
    %c0_11 = arith.constant 0 : index
    %c0_12 = arith.constant 0 : index
    %15 = vector.load %arg8[%c0_11, %c0_12] : memref<1x16xi32, #tpu.memory_space<vmem>>, vector<1x16xi32>
    %16 = vector.extract_strided_slice %14 {offsets = [0, 0], sizes = [8, 1], strides = [1, 1]} : vector<8x3xi32> to vector<8x1xi32>
    %17 = vector.broadcast %16 : vector<8x1xi32> to vector<8x16xi32>
    %18 = vector.broadcast %15 : vector<1x16xi32> to vector<8x16xi32>
    %19 = arith.cmpi eq, %17, %18 : vector<8x16xi32>
    %20 = vector.extract_strided_slice %14 {offsets = [0, 1], sizes = [8, 1], strides = [1, 1]} : vector<8x3xi32> to vector<8x1xi32>
    %21 = vector.broadcast %20 : vector<8x1xi32> to vector<8x16xi32>
    %22 = vector.broadcast %15 : vector<1x16xi32> to vector<8x16xi32>
    %23 = arith.cmpi eq, %21, %22 : vector<8x16xi32>
    %24 = arith.ori %19, %23 : vector<8x16xi1>
    %25 = vector.extract_strided_slice %14 {offsets = [0, 2], sizes = [8, 1], strides = [1, 1]} : vector<8x3xi32> to vector<8x1xi32>
    %26 = vector.broadcast %25 : vector<8x1xi32> to vector<8x16xi32>
    %27 = vector.broadcast %15 : vector<1x16xi32> to vector<8x16xi32>
    %28 = arith.cmpi eq, %26, %27 : vector<8x16xi32>
    %29 = arith.ori %24, %28 : vector<8x16xi1>
    %c0_13 = arith.constant 0 : index
    %c0_14 = arith.constant 0 : index
    %30 = vector.load %arg10[%c0_13, %c0_14] : memref<8x1xf32, #tpu.memory_space<vmem>>, vector<8x1xf32>
    %cst_15 = arith.constant 0.000000e+00 : f32
    %31 = vector.broadcast %cst_15 : f32 to vector<8x16xf32>
    %32 = arith.select %29, %31, %13 : vector<8x16xi1>, vector<8x16xf32>
    %cst_16 = arith.constant dense<0.000000e+00> : vector<8xf32>
    %33 = vector.multi_reduction <add>, %32, %cst_16 [1] : vector<8x16xf32> to vector<8xf32>
    %34 = vector.shape_cast %33 : vector<8xf32> to vector<8x1xf32>
    %35 = arith.addf %30, %34 : vector<8x1xf32>
    %c0_17 = arith.constant 0 : index
    %c0_18 = arith.constant 0 : index
    %36 = vector.load %arg10[%c0_17, %c0_18] : memref<8x1xf32, #tpu.memory_space<vmem>>, vector<8x1xf32>
    tpu.vector_store %arg10[%c0_17, %c0_18], %35 {strides = array<i32>} : memref<8x1xf32, #tpu.memory_space<vmem>>, vector<8x1xf32>,
    %c0_i32_19 = arith.constant 0 : i32
    %37 = arith.cmpi eq, %arg2, %c0_i32_19 : i32
    %38 = arith.extui %37 : i1 to i32
    %c0_i32_20 = arith.constant 0 : i32
    %39 = arith.cmpi ne, %38, %c0_i32_20 : i32
    scf.if %39 {
      %c0_21 = arith.constant 0 : index
      %c0_22 = arith.constant 0 : index
      %40 = vector.load %arg10[%c0_21, %c0_22] : memref<8x1xf32, #tpu.memory_space<vmem>>, vector<8x1xf32>
      %c0_23 = arith.constant 0 : index
      %c0_24 = arith.constant 0 : index
      %c0_25 = arith.constant 0 : index
      %41 = vector.load %arg9[%c0_23, %c0_24, %c0_25] : memref<1x8x1xf32, #tpu.memory_space<vmem>>, vector<1x8x1xf32>
      %42 = vector.shape_cast %41 : vector<1x8x1xf32> to vector<8x1xf32>
      %43 = vector.shape_cast %40 : vector<8x1xf32> to vector<1x8x1xf32>
      tpu.vector_store %arg9[%c0_23, %c0_24, %c0_25], %43 {strides = array<i32>} : memref<1x8x1xf32, #tpu.memory_space<vmem>>, vector<1x8x1xf32>,
    } else {
    }
    return
  }
  func.func @transform_0(%arg0: i32, %arg1: i32, %arg2: i32) -> (i32, i32) {
    %c0_i32 = arith.constant 0 : i32
    %c0_i32_0 = arith.constant 0 : i32
    return %arg1, %c0_i32 : i32, i32
  }
  func.func @transform_1(%arg0: i32, %arg1: i32, %arg2: i32) -> (i32, i32) {
    %c0_i32 = arith.constant 0 : i32
    %c0_i32_0 = arith.constant 0 : i32
    return %arg1, %c0_i32 : i32, i32
  }
  func.func @transform_2(%arg0: i32, %arg1: i32, %arg2: i32) -> (i32, i32) {
    %c0_i32 = arith.constant 0 : i32
    %c0_i32_0 = arith.constant 0 : i32
    return %arg1, %c0_i32 : i32, i32
  }
  func.func @transform_3(%arg0: i32, %arg1: i32, %arg2: i32) -> (i32, i32) {
    %c0_i32 = arith.constant 0 : i32
    %c0_i32_0 = arith.constant 0 : i32
    return %arg2, %c0_i32 : i32, i32
  }
  func.func @transform_4(%arg0: i32, %arg1: i32, %arg2: i32) -> (i32, i32) {
    %c0_i32 = arith.constant 0 : i32
    %c0_i32_0 = arith.constant 0 : i32
    return %c0_i32, %arg2 : i32, i32
  }
  func.func @transform_5(%arg0: i32, %arg1: i32, %arg2: i32) -> (i32, i32) {
    %c0_i32 = arith.constant 0 : i32
    %c0_i32_0 = arith.constant 0 : i32
    return %c0_i32, %arg2 : i32, i32
  }
  func.func @transform_6(%arg0: i32, %arg1: i32, %arg2: i32) -> (i32, i32, i32) {
    %c0_i32 = arith.constant 0 : i32
    %c0_i32_0 = arith.constant 0 : i32
    return %arg0, %arg1, %c0_i32 : i32, i32, i32
  }
}

</mosaic_0001>

<llo_original>
// kernel: tpu_custom_call.1
$region0: #{tpu_custom_call.1}
  #allocation0 [shape = 'u32[]', space=smem, size = 0x4, offset = 0x4, fixed_abs, tag = 'smem constant byte address 0x4 - core index']
  #allocation1 [shape = 'u32[72,128]{1,0:T(1,128)}', space=vmem, size = 0x9000, scoped, tag = 'internal scratch']
  #allocation2 [shape = 'f32[8,1]{1,0:T(8,128)}', space=vmem, size = 0x1000, scoped, tag = 'scratch operand']
  %s0 = inlined_call_operand.hbm [shape: f32[8,32], index: 0, kind: input, shape index: {}]
  %s1 = inlined_call_operand.vmem [shape: f32[8,1], index: 1, kind: input, shape index: {}]
  %s2 = inlined_call_operand.vmem [shape: s32[8,3], index: 2, kind: input, shape index: {}]
  %s3 = inlined_call_operand.vmem [shape: f32[16,32], index: 3, kind: input, shape index: {}]
  %s4 = inlined_call_operand.vmem [shape: f32[1,16], index: 4, kind: input, shape index: {}]
  %s5 = inlined_call_operand.vmem [shape: s32[1,16], index: 5, kind: input, shape index: {}]
  %s6 = inlined_call_operand.vmem [shape: f32[1,8,1], index: 6, kind: output, shape index: {}]
  %s7 = sld [smem:[#allocation0]]
  $region46: #{tpu_custom_call.1} parent=0
    _
  %s9 = ssub.s32 1, %s7
  %s10 = scalar_select 0, %s9, %s7
  $region1: #{tpu_custom_call.1} parent=0
    #allocation3 [shape = 'u8[4096]{0}', space=vmem, size = 0x1000, scoped, tag = 'input window, operand 0, single buffered']
    #allocation4 [shape = 's32[1]{0}', space=sflag, size = 0x4, scoped, tag = 'scoped memory for tpu_custom_call.1']
    %11 = vsyncpa [#allocation4], 0
    // Predicated region
    $region2: #{tpu_custom_call.1} parent=1 // pred_check
      _
    $region3: #{tpu_custom_call.1} parent=1 // pred_check_branch
      %13 = sbr.rel (0) target = $region5
    $region4: #{tpu_custom_call.1} parent=1 // pred_region
      %15 = vsyncadd [#allocation4], 0
      %s17 = sshll.u32 %s0, 4
      %s18 = int_to_ptr.hbm [resolvable:$true] %s17
      %s19 = sshll.u32 [#allocation3], 4
      %s20 = int_to_ptr.vmem [resolvable:$true] %s19
      %22 = dma.hbm_to_vmem [thread:$0]  %s18, 128, %s20, [#allocation4]
    $region5: #{tpu_custom_call.1} parent=1 // pred_fallthru
      _
    // Predicated region
    $region6: #{tpu_custom_call.1} parent=1 // pred_check
      _
    $region7: #{tpu_custom_call.1} parent=1 // pred_check_branch
      %24 = sbr.rel (0) target = $region9
    $region8: #{tpu_custom_call.1} parent=1 // pred_region
      _
    $region9: #{tpu_custom_call.1} parent=1 // pred_fallthru
      _
    // Predicated region
    $region10: #{tpu_custom_call.1} parent=1 // pred_check
      _
    $region11: #{tpu_custom_call.1} parent=1 // pred_check_branch
      %26 = sbr.rel (0) target = $region13
    $region12: #{tpu_custom_call.1} parent=1 // pred_region
      _
    $region13: #{tpu_custom_call.1} parent=1 // pred_fallthru
      _
    // Predicated region
    $region14: #{tpu_custom_call.1} parent=1 // pred_check
      _
    $region15: #{tpu_custom_call.1} parent=1 // pred_check_branch
      %28 = sbr.rel (0) target = $region17
    $region16: #{tpu_custom_call.1} parent=1 // pred_region
      _
    $region17: #{tpu_custom_call.1} parent=1 // pred_fallthru
      _
    // Predicated region
    $region18: #{tpu_custom_call.1} parent=1 // pred_check
      _
    $region19: #{tpu_custom_call.1} parent=1 // pred_check_branch
      %30 = sbr.rel (0) target = $region21
    $region20: #{tpu_custom_call.1} parent=1 // pred_region
      _
    $region21: #{tpu_custom_call.1} parent=1 // pred_fallthru
      _
    // Predicated region
    $region22: #{tpu_custom_call.1} parent=1 // pred_check
      _
    $region23: #{tpu_custom_call.1} parent=1 // pred_check_branch
      %32 = sbr.rel (0) target = $region25
    $region24: #{tpu_custom_call.1} parent=1 // pred_region
      _
    $region25: #{tpu_custom_call.1} parent=1 // pred_fallthru
      _
    // Predicated region
    $region26: #{tpu_custom_call.1} parent=1 // pred_check
      _
    $region27: #{tpu_custom_call.1} parent=1 // pred_check_branch
      %34 = sbr.rel (0) target = $region29
    $region28: #{tpu_custom_call.1} parent=1 // pred_region
      %36 = dma.done [#allocation4], 128
    $region29: #{tpu_custom_call.1} parent=1 // pred_fallthru
      _
    %p37 = scmp.eq.s32.totalorder 0, 0
    // Predicated region
    $region30: #{tpu_custom_call.1} parent=1 // pred_check
      %p38 = pneg %p37
    $region31: #{tpu_custom_call.1} parent=1 // pred_check_branch
      %40 = sbr.rel (%p38) target = $region33
    $region32: #{tpu_custom_call.1} parent=1 // pred_region
      %vm41 = vcmask 7168
      %42 = vst.msk [vmem:[#allocation2] sm:$0xff] %vm41, 0.0
    $region33: #{tpu_custom_call.1} parent=1 // pred_fallthru
      _
    %v43 = vld [vmem:[#allocation3] sm:$0xff]
    %v44 = vld [vmem:[%s3] sm:$0xff]
    %v45 = vld [vmem:[%s3 + $0x8] sm:$0xff]
    %vm46 = vcmask 261120
    %v48 = vsel %vm46, %v43, 0
    %v51 = vsel %vm46, %v44, 0
    %v54 = vsel %vm46, %v45, 0
    %56 = vmatpush.xpose.msra.mxu0 0.0
    %57 = vmatpush.xpose.msra.mxu0 0.0
    %58 = vmatpush.xpose.msra.mxu0 0.0
    %59 = vmatpush.xpose.msra.mxu0 0.0
    %60 = vmatpush.xpose.msra.mxu0 0.0
    %61 = vmatpush.xpose.msra.mxu0 0.0
    %62 = vmatpush.xpose.msra.mxu0 0.0
    %63 = vmatpush.xpose.msra.mxu0 0.0
    %64 = vmatpush.xpose.msra.mxu0 0.0
    %65 = vmatpush.xpose.msra.mxu0 0.0
    %66 = vmatpush.xpose.msra.mxu0 0.0
    %67 = vmatpush.xpose.msra.mxu0 0.0
    %68 = vmatpush.xpose.msra.mxu0 0.0
    %69 = vmatpush.xpose.msra.mxu0 0.0
    %70 = vmatpush.xpose.msra.mxu0 %v54
    %71 = vmatpush.xpose.msra.mxu0 %v51
    %72 = vmatmul.f32.gmra.mxu0 %v48
    %v73 = vpop.f32.mrf.mxu0
    %v74 = vadd.f32 0.0, %v73
    %75 = vdwg.mxu0
    %v76 = vld [vmem:[%s1] sm:$0xff]
    %v77 = vld [vmem:[%s4] sm:$0x1]
    %79 = vset.pattern.permute.xlu0 0
    %80 = vperm.xlu0 %79, %v76
    %v81 = vpop.permute.xlu0 %80
    %v84 = vperm.slane %v77, 0
    %v86 = vadd.f32 %v81, %v84
    %v87 = vsub.f32 %v86, %v74
    %v88 = vmax.f32 %v87, 1.0
    %v89 = vld [vmem:[%s2] sm:$0xff]
    %v90 = vld [vmem:[%s5] sm:$0x1]
    %91 = vset.pattern.permute.xlu0 0
    %92 = vperm.xlu0 %91, %v89
    %v93 = vpop.permute.xlu0 %92
    %v94 = vperm.slane %v90, 0
    %vm95 = vcmp.eq.s32.totalorder %v93, %v94
    %96 = vset.pattern.permute.xlu0 1
    %97 = vperm.xlu0 %96, %v89
    %v98 = vpop.permute.xlu0 %97
    %vm99 = vcmp.eq.s32.totalorder %v98, %v94
    %vm100 = vmor %vm95, %vm99
    %101 = vset.pattern.permute.xlu0 2
    %102 = vperm.xlu0 %101, %v89
    %v103 = vpop.permute.xlu0 %102
    %vm104 = vcmp.eq.s32.totalorder %v103, %v94
    %vm105 = vmor %vm100, %vm104
    %v106 = vld [vmem:[#allocation2] sm:$0xff]
    %v107 = vsel %vm105, 0.0, %v88
    %vm108 = vcmask 130048
    %v109 = vsel %vm108, %v107, 0.0
    %110 = vadd.xlane.f32.xlu0 %v109
    %v111 = vpop.xlane.xlu0 %110
    %v112 = vadd.f32 %v106, %v111
    %vm113 = vcmask 7168
    %114 = vst.msk [vmem:[#allocation2] sm:$0xff] %vm113, %v112
    // Predicated region
    $region34: #{tpu_custom_call.1} parent=1 // pred_check
      %p115 = pneg %p37
    $region35: #{tpu_custom_call.1} parent=1 // pred_check_branch
      %117 = sbr.rel (%p115) target = $region37
    $region36: #{tpu_custom_call.1} parent=1 // pred_region
      %v118 = vld [vmem:[#allocation2] sm:$0xff]
      %119 = vst.msk [vmem:[%s6] sm:$0xff] %vm113, %v118
    $region37: #{tpu_custom_call.1} parent=1 // pred_fallthru
      _
    // Predicated region
    $region38: #{tpu_custom_call.1} parent=1 // pred_check
      _
    $region39: #{tpu_custom_call.1} parent=1 // pred_check_branch
      %121 = sbr.rel (0) target = $region41
    $region40: #{tpu_custom_call.1} parent=1 // pred_region
      _
    $region41: #{tpu_custom_call.1} parent=1 // pred_fallthru
      _
    // Predicated region
    $region42: #{tpu_custom_call.1} parent=1 // pred_check
      _
    $region43: #{tpu_custom_call.1} parent=1 // pred_check_branch
      %123 = sbr.rel (0) target = $region45
    $region44: #{tpu_custom_call.1} parent=1 // pred_region
      _
    $region45: #{tpu_custom_call.1} parent=1 // pred_fallthru
      _
    %124 = vsyncpa [#allocation4], 1

</llo_original>
